<compile_context>
chip_gen: v5e
topology: v5e:2x2
jax: 0.10.0
libtpu: 0.0.40
codegen_flags: <defaults>
</compile_context>

<pallas_src>
import functools

import jax
import jax.numpy as jnp
from jax import lax
from jax.experimental import pallas as pl
from jax.experimental.pallas import tpu as pltpu

_SUBLANES = 8
_LANES = 128
_VREG_ELEMS = _SUBLANES * _LANES           # 1024 elements per (8, 128) f32 vreg
_MAX_GROUPS_PER_BLOCK = 512                # 512 * 4 KiB = 2 MiB per f32 input tile
                                           # -> 4 inputs x 2 pipeline bufs = 16 MiB VMEM
                                           #    (fits the 32 MiB scoped limit on all chips)


def _to_f32(x):
    # Only cast when needed (keeps math in f32; bf16 inputs halve HBM traffic).
    return x if x.dtype == jnp.float32 else x.astype(jnp.float32)


def _partial_loss_kernel(pp_ref, pt_ref, tp_ref, tt_ref, out_ref, *,
                         tg, groups, ragged, p_scale, t_scale):
    # Tiles are (tg, 8, 128). Sum over the leading vreg-group axis is per-lane
    # VPU adds; no cross-lane XLU reduce in the hot loop.
    pd = _to_f32(pp_ref[...]) - _to_f32(pt_ref[...])
    td = _to_f32(tp_ref[...]) - _to_f32(tt_ref[...])
    psq = pd * pd
    tsq = td * td
    if ragged:
        # The last grid block overhangs the (groups, 8, 128) array; the DMA
        # only fills the valid rows and the rest of the tile is stale VMEM.
        # Zero those rows (compare/select is free VPU filler under mem-bound).
        rows = lax.broadcasted_iota(jnp.int32, (tg, _SUBLANES, _LANES), 0)
        valid = groups - pl.program_id(0) * tg
        keep = rows < valid
        psq = jnp.where(keep, psq, 0.0)
        tsq = jnp.where(keep, tsq, 0.0)
    out_ref[...] = (p_scale * jnp.sum(psq, axis=0, keepdims=True)
                    + t_scale * jnp.sum(tsq, axis=0, keepdims=True))


def _as_groups(x, groups):
    flat = x.reshape(-1)                       # contiguous -> free bitcast
    pad = groups * _VREG_ELEMS - flat.shape[0]
    if pad:
        # Zero padding -> diff 0 -> contributes 0 to both sums.
        # TODO(synk): element counts not divisible by 1024 still force one
        # padded HBM copy per tensor; a manual-DMA tail path could avoid it.
        flat = jnp.pad(flat, (0, pad))
    return flat.reshape(groups, _SUBLANES, _LANES)   # lane-dense (groups, 8, 128)


def performance_custom_loss(pressure_pred, temperature_pred,
                            pressure_true, temperature_true):
    # Glue (same as the PyTorch module): drop the channel dim of the preds.
    pressure_pred = jnp.squeeze(pressure_pred, axis=1)        # (B, H, W)
    temperature_pred = jnp.squeeze(temperature_pred, axis=1)  # (B, H, W)

    B, H, W = pressure_pred.shape
    assert pressure_true.shape == (B, H, W)
    assert temperature_true.shape == (B, H, W)

    total = B * H * W
    groups = pl.cdiv(total, _VREG_ELEMS)
    if groups <= _MAX_GROUPS_PER_BLOCK:
        tg = groups
        ragged = False
    else:
        tg = _MAX_GROUPS_PER_BLOCK
        ragged = (groups % tg) != 0
    num_blocks = pl.cdiv(groups, tg)

    pp = _as_groups(pressure_pred, groups)
    pt = _as_groups(pressure_true, groups)
    tp = _as_groups(temperature_pred, groups)
    tt = _as_groups(temperature_true, groups)

    kernel = functools.partial(
        _partial_loss_kernel,
        tg=tg, groups=groups, ragged=ragged,
        p_scale=1.0 / float(total),   # MSELoss: mean over B*H*W
        t_scale=1.0 / float(B),       # per-sample HW sum, batch mean
    )

    in_blk = pl.BlockSpec((tg, _SUBLANES, _LANES), lambda i: (i, 0, 0))
    out_blk = pl.BlockSpec((1, _SUBLANES, _LANES), lambda i: (i, 0, 0))

    partials = pl.pallas_call(
        kernel,
        out_shape=jax.ShapeDtypeStruct((num_blocks, _SUBLANES, _LANES), jnp.float32),
        grid_spec=pltpu.PrefetchScalarGridSpec(
            num_scalar_prefetch=0,
            grid=(num_blocks,),
            in_specs=[in_blk, in_blk, in_blk, in_blk],
            out_specs=out_blk,
        ),
        compiler_params=pltpu.CompilerParams(
            dimension_semantics=("parallel",),       # independent blocks -> megacore-shardable
            vmem_limit_bytes=32 * 1024 * 1024,       # explicit headroom (v5e default is 16 MiB)
        ),
    )(pp, pt, tp, tt)

    # Final cross-lane / cross-block reduction on the tiny partials.
    return jnp.sum(partials)


def _reference(pressure_pred, temperature_pred, pressure_true, temperature_true):
    pp = jnp.squeeze(pressure_pred, axis=1)
    tp = jnp.squeeze(temperature_pred, axis=1)
    pressure_loss = jnp.mean((pp - pressure_true) ** 2)
    t_loss = jnp.mean(jnp.sum((tp - temperature_true) ** 2, axis=(1, 2)))
    return pressure_loss + t_loss


if __name__ == "__main__":
    B, H, W = 2, 16, 16
    key = jax.random.PRNGKey(0)
    k1, k2, k3, k4 = jax.random.split(key, 4)

    pressure_pred = jax.random.normal(k1, (B, 1, H, W), dtype=jnp.float32)
    temperature_pred = jax.random.normal(k2, (B, 1, H, W), dtype=jnp.float32)
    pressure_true = jax.random.normal(k3, (B, H, W), dtype=jnp.float32)
    temperature_true = jax.random.normal(k4, (B, H, W), dtype=jnp.float32)

    out = jax.jit(performance_custom_loss)(pressure_pred, temperature_pred,
                                           pressure_true, temperature_true)
    out = jax.block_until_ready(out)

    ref = _reference(pressure_pred, temperature_pred,
                     pressure_true, temperature_true)
    assert jnp.allclose(out, ref, rtol=1e-5, atol=1e-5), (out, ref)

    print("KERNEL_OK")
</pallas_src>

<mosaic_0001>
module attributes {stable_mosaic.version = 11 : i64} {
  func.func @_partial_loss_kernel(%arg0: i32, %arg1: memref<1x8x128xf32, #tpu.memory_space<vmem>>, %arg2: memref<1x8x128xf32, #tpu.memory_space<vmem>>, %arg3: memref<1x8x128xf32, #tpu.memory_space<vmem>>, %arg4: memref<1x8x128xf32, #tpu.memory_space<vmem>>, %arg5: memref<1x8x128xf32, #tpu.memory_space<vmem>>) attributes {dimension_semantics = [#tpu.dimension_semantics<parallel>], iteration_bounds = array<i64: 1>, scalar_prefetch = 0 : i64, scratch_operands = 0 : i64, tpu.core_type = #tpu.core_type<tc>, window_params = [{transform_indices = @transform_0, window_bounds = array<i64: 1, 8, 128>}, {transform_indices = @transform_1, window_bounds = array<i64: 1, 8, 128>}, {transform_indices = @transform_2, window_bounds = array<i64: 1, 8, 128>}, {transform_indices = @transform_3, window_bounds = array<i64: 1, 8, 128>}, {transform_indices = @transform_4, window_bounds = array<i64: 1, 8, 128>}]} {
    %c0 = arith.constant 0 : index
    %c0_0 = arith.constant 0 : index
    %c0_1 = arith.constant 0 : index
    %0 = vector.load %arg1[%c0, %c0_0, %c0_1] : memref<1x8x128xf32, #tpu.memory_space<vmem>>, vector<1x8x128xf32>
    %c0_2 = arith.constant 0 : index
    %c0_3 = arith.constant 0 : index
    %c0_4 = arith.constant 0 : index
    %1 = vector.load %arg2[%c0_2, %c0_3, %c0_4] : memref<1x8x128xf32, #tpu.memory_space<vmem>>, vector<1x8x128xf32>
    %2 = arith.subf %0, %1 : vector<1x8x128xf32>
    %c0_5 = arith.constant 0 : index
    %c0_6 = arith.constant 0 : index
    %c0_7 = arith.constant 0 : index
    %3 = vector.load %arg3[%c0_5, %c0_6, %c0_7] : memref<1x8x128xf32, #tpu.memory_space<vmem>>, vector<1x8x128xf32>
    %c0_8 = arith.constant 0 : index
    %c0_9 = arith.constant 0 : index
    %c0_10 = arith.constant 0 : index
    %4 = vector.load %arg4[%c0_8, %c0_9, %c0_10] : memref<1x8x128xf32, #tpu.memory_space<vmem>>, vector<1x8x128xf32>
    %5 = arith.subf %3, %4 : vector<1x8x128xf32>
    %6 = arith.mulf %2, %2 : vector<1x8x128xf32>
    %7 = arith.mulf %5, %5 : vector<1x8x128xf32>
    %cst = arith.constant dense<0.000000e+00> : vector<8x128xf32>
    %8 = vector.multi_reduction <add>, %6, %cst [0] : vector<1x8x128xf32> to vector<8x128xf32>
    %9 = vector.shape_cast %8 : vector<8x128xf32> to vector<1x8x128xf32>
    %cst_11 = arith.constant 0.001953125 : f32
    %10 = vector.broadcast %cst_11 : f32 to vector<1x8x128xf32>
    %11 = arith.mulf %10, %9 : vector<1x8x128xf32>
    %cst_12 = arith.constant dense<0.000000e+00> : vector<8x128xf32>
    %12 = vector.multi_reduction <add>, %7, %cst_12 [0] : vector<1x8x128xf32> to vector<8x128xf32>
    %13 = vector.shape_cast %12 : vector<8x128xf32> to vector<1x8x128xf32>
    %cst_13 = arith.constant 5.000000e-01 : f32
    %14 = vector.broadcast %cst_13 : f32 to vector<1x8x128xf32>
    %15 = arith.mulf %14, %13 : vector<1x8x128xf32>
    %16 = arith.addf %11, %15 : vector<1x8x128xf32>
    %c0_14 = arith.constant 0 : index
    %c0_15 = arith.constant 0 : index
    %c0_16 = arith.constant 0 : index
    %17 = vector.load %arg5[%c0_14, %c0_15, %c0_16] : memref<1x8x128xf32, #tpu.memory_space<vmem>>, vector<1x8x128xf32>
    tpu.vector_store %arg5[%c0_14, %c0_15, %c0_16], %16 {strides = array<i32>} : memref<1x8x128xf32, #tpu.memory_space<vmem>>, vector<1x8x128xf32>,
    return
  }
  func.func @transform_0(%arg0: i32) -> (i32, i32, i32) {
    %c0_i32 = arith.constant 0 : i32
    %c0_i32_0 = arith.constant 0 : i32
    %c0_i32_1 = arith.constant 0 : i32
    return %arg0, %c0_i32, %c0_i32_0 : i32, i32, i32
  }
  func.func @transform_1(%arg0: i32) -> (i32, i32, i32) {
    %c0_i32 = arith.constant 0 : i32
    %c0_i32_0 = arith.constant 0 : i32
    %c0_i32_1 = arith.constant 0 : i32
    return %arg0, %c0_i32, %c0_i32_0 : i32, i32, i32
  }
  func.func @transform_2(%arg0: i32) -> (i32, i32, i32) {
    %c0_i32 = arith.constant 0 : i32
    %c0_i32_0 = arith.constant 0 : i32
    %c0_i32_1 = arith.constant 0 : i32
    return %arg0, %c0_i32, %c0_i32_0 : i32, i32, i32
  }
  func.func @transform_3(%arg0: i32) -> (i32, i32, i32) {
    %c0_i32 = arith.constant 0 : i32
    %c0_i32_0 = arith.constant 0 : i32
    %c0_i32_1 = arith.constant 0 : i32
    return %arg0, %c0_i32, %c0_i32_0 : i32, i32, i32
  }
  func.func @transform_4(%arg0: i32) -> (i32, i32, i32) {
    %c0_i32 = arith.constant 0 : i32
    %c0_i32_0 = arith.constant 0 : i32
    %c0_i32_1 = arith.constant 0 : i32
    return %arg0, %c0_i32, %c0_i32_0 : i32, i32, i32
  }
}

</mosaic_0001>

<llo_original>
// kernel: squeeze.2
$region0: #{squeeze.2}
  %s0 = inlined_call_operand.hbm [shape: f32[2,1,16,16], index: 0, kind: input, shape index: {}]
  %s1 = inlined_call_operand.vmem [shape: f32[512], index: 1, kind: output, shape index: {}]
  $region1: #{squeeze.2} parent=0
    #allocation0 [shape = 'u8[16384]{0}', space=vmem, size = 0x4000, scoped, tag = 'operand span for operand 0']
    #allocation1 [shape = 's32[1]{0}', space=sflag, size = 0x4, scoped, tag = 'scoped memory for squeeze.2']
    #allocation2 [shape = 'u8[4096]{0}', space=vmem, size = 0x1000, scoped, tag = 'scoped mem for output reshape']
    %2 = vsyncpa [#allocation1], 0
    %4 = vsyncadd [#allocation1], 0
    %s6 = sshll.u32 %s0, 4
    %s7 = int_to_ptr.hbm [resolvable:$true] %s6
    %s8 = sshll.u32 [#allocation0], 4
    %s9 = int_to_ptr.vmem [resolvable:$true] %s8
    %11 = dma.hbm_to_vmem [thread:$0]  %s7, 512, %s9, [#allocation1]
    %13 = dma.done [#allocation1], 512
    %v14 = vld [vmem:[#allocation0] ss:$8 sm:$0xf]
    %vm15 = vcmask 130048
    %16 = vst.msk [vmem:[#allocation2] sm:$0xf] %vm15, %v14
    %s17 = scalar_lea.vmem [#allocation0], 7
    %v18 = vld [vmem:[%s17] ss:$8 sm:$0xf]
    %19 = vrot.lane.b32.xlu0 %v18, 112
    %v20 = vpop.permute.xlu0 %19
    %vm21 = vcmask 1048448
    %22 = vst.msk [vmem:[#allocation2] sm:$0xf] %vm21, %v20
    %s23 = scalar_lea.vmem [#allocation0], 6
    %v24 = vld [vmem:[%s23] ss:$8 sm:$0xf]
    %25 = vrot.lane.b32.xlu0 %v24, 96
    %v26 = vpop.permute.xlu0 %25
    %vm27 = vcmask 917248
    %28 = vst.msk [vmem:[#allocation2] sm:$0xf] %vm27, %v26
    %s29 = scalar_lea.vmem [#allocation0], 5
    %v30 = vld [vmem:[%s29] ss:$8 sm:$0xf]
    %31 = vrot.lane.b32.xlu0 %v30, 80
    %v32 = vpop.permute.xlu0 %31
    %vm33 = vcmask 786048
    %34 = vst.msk [vmem:[#allocation2] sm:$0xf] %vm33, %v32
    %s35 = scalar_lea.vmem [#allocation0], 4
    %v36 = vld [vmem:[%s35] ss:$8 sm:$0xf]
    %37 = vrot.lane.b32.xlu0 %v36, 64
    %v38 = vpop.permute.xlu0 %37
    %vm39 = vcmask 654848
    %40 = vst.msk [vmem:[#allocation2] sm:$0xf] %vm39, %v38
    %s41 = scalar_lea.vmem [#allocation0], 3
    %v42 = vld [vmem:[%s41] ss:$8 sm:$0xf]
    %43 = vrot.lane.b32.xlu0 %v42, 48
    %v44 = vpop.permute.xlu0 %43
    %vm45 = vcmask 523648
    %46 = vst.msk [vmem:[#allocation2] sm:$0xf] %vm45, %v44
    %s47 = scalar_lea.vmem [#allocation0], 2
    %v48 = vld [vmem:[%s47] ss:$8 sm:$0xf]
    %49 = vrot.lane.b32.xlu0 %v48, 32
    %v50 = vpop.permute.xlu0 %49
    %vm51 = vcmask 392448
    %52 = vst.msk [vmem:[#allocation2] sm:$0xf] %vm51, %v50
    %s53 = scalar_lea.vmem [#allocation0], 1
    %v54 = vld [vmem:[%s53] ss:$8 sm:$0xf]
    %55 = vrot.lane.b32.xlu0 %v54, 16
    %v56 = vpop.permute.xlu0 %55
    %vm57 = vcmask 261248
    %58 = vst.msk [vmem:[#allocation2] sm:$0xf] %vm57, %v56
    %s60 = ssub.s32 16, 1
    %v61 = vld [vmem:[#allocation2] sm:%s60]
    %s63 = ssub.s32 16, 1
    %64 = vst [vmem:[%s1] sm:%s63] %v61
    %65 = vsyncpa [#allocation1], 1

// kernel: squeeze.3
$region0: #{squeeze.3}
  %s0 = inlined_call_operand.vmem [shape: f32[2,1,16,16], index: 0, kind: input, shape index: {}]
  %s1 = inlined_call_operand.vmem [shape: f32[512], index: 1, kind: output, shape index: {}]
  $region1: #{squeeze.3} parent=0
    #allocation0 [shape = 'u8[4096]{0}', space=vmem, size = 0x1000, scoped, tag = 'scoped mem for output reshape']
    %v2 = vld [vmem:[%s0] ss:$8 sm:$0xf]
    %vm3 = vcmask 130048
    %4 = vst.msk [vmem:[#allocation0] sm:$0xf] %vm3, %v2
    %s5 = scalar_lea.vmem %s0, 7
    %v6 = vld [vmem:[%s5] ss:$8 sm:$0xf]
    %7 = vrot.lane.b32.xlu0 %v6, 112
    %v8 = vpop.permute.xlu0 %7
    %vm9 = vcmask 1048448
    %10 = vst.msk [vmem:[#allocation0] sm:$0xf] %vm9, %v8
    %s11 = scalar_lea.vmem %s0, 6
    %v12 = vld [vmem:[%s11] ss:$8 sm:$0xf]
    %13 = vrot.lane.b32.xlu0 %v12, 96
    %v14 = vpop.permute.xlu0 %13
    %vm15 = vcmask 917248
    %16 = vst.msk [vmem:[#allocation0] sm:$0xf] %vm15, %v14
    %s17 = scalar_lea.vmem %s0, 5
    %v18 = vld [vmem:[%s17] ss:$8 sm:$0xf]
    %19 = vrot.lane.b32.xlu0 %v18, 80
    %v20 = vpop.permute.xlu0 %19
    %vm21 = vcmask 786048
    %22 = vst.msk [vmem:[#allocation0] sm:$0xf] %vm21, %v20
    %s23 = scalar_lea.vmem %s0, 4
    %v24 = vld [vmem:[%s23] ss:$8 sm:$0xf]
    %25 = vrot.lane.b32.xlu0 %v24, 64
    %v26 = vpop.permute.xlu0 %25
    %vm27 = vcmask 654848
    %28 = vst.msk [vmem:[#allocation0] sm:$0xf] %vm27, %v26
    %s29 = scalar_lea.vmem %s0, 3
    %v30 = vld [vmem:[%s29] ss:$8 sm:$0xf]
    %31 = vrot.lane.b32.xlu0 %v30, 48
    %v32 = vpop.permute.xlu0 %31
    %vm33 = vcmask 523648
    %34 = vst.msk [vmem:[#allocation0] sm:$0xf] %vm33, %v32
    %s35 = scalar_lea.vmem %s0, 2
    %v36 = vld [vmem:[%s35] ss:$8 sm:$0xf]
    %37 = vrot.lane.b32.xlu0 %v36, 32
    %v38 = vpop.permute.xlu0 %37
    %vm39 = vcmask 392448
    %40 = vst.msk [vmem:[#allocation0] sm:$0xf] %vm39, %v38
    %s41 = scalar_lea.vmem %s0, 1
    %v42 = vld [vmem:[%s41] ss:$8 sm:$0xf]
    %43 = vrot.lane.b32.xlu0 %v42, 16
    %v44 = vpop.permute.xlu0 %43
    %vm45 = vcmask 261248
    %46 = vst.msk [vmem:[#allocation0] sm:$0xf] %vm45, %v44
    %s48 = ssub.s32 16, 1
    %v49 = vld [vmem:[#allocation0] sm:%s48]
    %s51 = ssub.s32 16, 1
    %52 = vst [vmem:[%s1] sm:%s51] %v49

// kernel: performance_custom_loss.1
$region0: #{performance_custom_loss.1}
  #allocation0 [shape = 'u32[]', space=smem, size = 0x4, offset = 0x4, fixed_abs, tag = 'smem constant byte address 0x4 - core index']
  #allocation1 [shape = 'u32[72,128]{1,0:T(1,128)}', space=vmem, size = 0x9000, scoped, tag = 'internal scratch']
  %s0 = inlined_call_operand.vmem [shape: f32[1,8,128], index: 0, kind: input, shape index: {}]
  %s1 = inlined_call_operand.vmem [shape: f32[1,8,128], index: 1, kind: input, shape index: {}]
  %s2 = inlined_call_operand.vmem [shape: f32[1,8,128], index: 2, kind: input, shape index: {}]
  %s3 = inlined_call_operand.vmem [shape: f32[1,8,128], index: 3, kind: input, shape index: {}]
  %s4 = inlined_call_operand.vmem [shape: f32[1,8,128], index: 4, kind: output, shape index: {}]
  %s5 = sld [smem:[#allocation0]]
  $region26: #{performance_custom_loss.1} parent=0
    _
  %s7 = ssub.s32 1, %s5
  %s8 = scalar_select 0, %s7, %s5
  // Predicated region
  $region2: #{performance_custom_loss.1} parent=0 // pred_check
    _
  $region3: #{performance_custom_loss.1} parent=0 // pred_check_branch
    %10 = sbr.rel (0) target = $region5
  $region4: #{performance_custom_loss.1} parent=0 // pred_region
    _
  $region5: #{performance_custom_loss.1} parent=0 // pred_fallthru
    _
  // Predicated region
  $region6: #{performance_custom_loss.1} parent=0 // pred_check
    _
  $region7: #{performance_custom_loss.1} parent=0 // pred_check_branch
    %12 = sbr.rel (0) target = $region9
  $region8: #{performance_custom_loss.1} parent=0 // pred_region
    _
  $region9: #{performance_custom_loss.1} parent=0 // pred_fallthru
    _
  // Predicated region
  $region10: #{performance_custom_loss.1} parent=0 // pred_check
    _
  $region11: #{performance_custom_loss.1} parent=0 // pred_check_branch
    %14 = sbr.rel (0) target = $region13
  $region12: #{performance_custom_loss.1} parent=0 // pred_region
    _
  $region13: #{performance_custom_loss.1} parent=0 // pred_fallthru
    _
  // Predicated region
  $region14: #{performance_custom_loss.1} parent=0 // pred_check
    _
  $region15: #{performance_custom_loss.1} parent=0 // pred_check_branch
    %16 = sbr.rel (0) target = $region17
  $region16: #{performance_custom_loss.1} parent=0 // pred_region
    _
  $region17: #{performance_custom_loss.1} parent=0 // pred_fallthru
    _
  %v17 = vld [vmem:[%s0] sm:$0xff]
  %v18 = vld [vmem:[%s1] sm:$0xff]
  %v19 = vsub.f32 %v17, %v18
  %v20 = vld [vmem:[%s2] sm:$0xff]
  %v21 = vld [vmem:[%s3] sm:$0xff]
  %v22 = vsub.f32 %v20, %v21
  %v23 = vmul.f32 %v19, %v19
  %v24 = vmul.f32 %v22, %v22
  %v25 = vadd.f32 %v23, 0.0
  %v26 = vmul.f32 %v25, 0.001953125
  %v27 = vadd.f32 %v24, 0.0
  %v28 = vmul.f32 %v27, 0.5
  %v29 = vadd.f32 %v26, %v28
  %30 = vst [vmem:[%s4] sm:$0xff] %v29
  // Predicated region
  $region18: #{performance_custom_loss.1} parent=0 // pred_check
    _
  $region19: #{performance_custom_loss.1} parent=0 // pred_check_branch
    %32 = sbr.rel (0) target = $region21
  $region20: #{performance_custom_loss.1} parent=0 // pred_region
    _
  $region21: #{performance_custom_loss.1} parent=0 // pred_fallthru
    _
  // Predicated region
  $region22: #{performance_custom_loss.1} parent=0 // pred_check
    _
  $region23: #{performance_custom_loss.1} parent=0 // pred_check_branch
    %34 = sbr.rel (0) target = $region25
  $region24: #{performance_custom_loss.1} parent=0 // pred_region
    _
  $region25: #{performance_custom_loss.1} parent=0 // pred_fallthru
    _

</llo_original>
